<compile_context>
chip_gen: v7x
topology: tpu7x:2x2x1
jax: 0.10.0
libtpu: 0.0.40
codegen_flags: <defaults>
</compile_context>

<pallas_src>
import functools

import jax
import jax.numpy as jnp
from jax.experimental import pallas as pl
from jax.experimental.pallas import tpu as pltpu

HIDDEN_SIZES = [128, 64, 32]
LANES = 128      # TPU lane width: all feature (output) dims padded to this
SUBLANES = 8     # batch tile must be a multiple of this


def _round_up(x, m):
    return (x + m - 1) // m * m


def _fused_mlp_kernel(*refs, num_layers):
    """One batch tile through the whole MLP.

    refs = (x_ref, w_0..w_{L-1}, b_0..b_{L-1}, o_ref)
      x_ref : [TB, In]            (VMEM, f32 or bf16)
      w_i   : [In_i_p, Out_i_p]   (VMEM, matmul dtype, zero-padded to 128 lanes)
      b_i   : [1, Out_i_p]        (VMEM, f32, zero-padded)
      o_ref : [TB, Out_p]         (VMEM, f32, lane-dense 128-wide store)
    """
    x_ref = refs[0]
    w_refs = refs[1:1 + num_layers]
    b_refs = refs[1 + num_layers:1 + 2 * num_layers]
    o_ref = refs[1 + 2 * num_layers]

    h = x_ref[...]
    for i in range(num_layers):
        w = w_refs[i][...]
        # MXU matmul with f32 accumulation; bias add + ReLU stay in f32 on the VPU.
        acc = jnp.dot(h.astype(w.dtype), w, preferred_element_type=jnp.float32)
        acc = acc + b_refs[i][...]
        if i < num_layers - 1:
            acc = jnp.maximum(acc, 0.0)
        h = acc
    o_ref[...] = h.astype(o_ref.dtype)


def mlp_forward(params, x, *, block_batch=512, matmul_dtype=jnp.float32):
    """Fused MLP forward.

    params: list of (w_t [in, out] f32, b [out] f32)  -- w_t is the transposed
            PyTorch nn.Linear weight so the hot path is x @ W_t + b.
    x:      [B, input_size] f32
    returns [B, num_classes] f32
    """
    num_layers = len(params)
    B, in0 = x.shape
    num_classes = params[-1][0].shape[1]

    # ---- zero-pad feature dims to 128 lanes (lane-dense MXU tiles & stores) ----
    # (In a real model this padding/casting would be done once, outside the step.)
    padded_ws, padded_bs = [], []
    prev_out_p = in0                     # layer-0 input dim stays unpadded
    for (w_t, b) in params:
        in_f, out_f = w_t.shape
        in_p = prev_out_p                # matches previous layer's padded output
        out_p = _round_up(out_f, LANES)
        w_p = jnp.zeros((in_p, out_p), dtype=matmul_dtype)
        w_p = w_p.at[:in_f, :out_f].set(w_t.astype(matmul_dtype))
        b_p = jnp.zeros((1, out_p), dtype=jnp.float32)
        b_p = b_p.at[0, :out_f].set(b.astype(jnp.float32))
        padded_ws.append(w_p)
        padded_bs.append(b_p)
        prev_out_p = out_p
    out_p_last = prev_out_p

    # ---- tile / pad the batch dimension ----
    tb = min(_round_up(block_batch, SUBLANES), _round_up(B, SUBLANES))
    b_pad = _round_up(B, tb)
    x_p = x.astype(matmul_dtype)
    if b_pad != B:
        x_p = jnp.pad(x_p, ((0, b_pad - B), (0, 0)))
    grid = (b_pad // tb,)

    kernel = functools.partial(_fused_mlp_kernel, num_layers=num_layers)

    in_specs = [pl.BlockSpec((tb, in0), lambda i: (i, 0))]
    # Constant index_map -> weights/biases are DMA'd once and stay VMEM-resident.
    in_specs += [pl.BlockSpec(w.shape, lambda i: (0, 0)) for w in padded_ws]
    in_specs += [pl.BlockSpec(b.shape, lambda i: (0, 0)) for b in padded_bs]

    flops = 2 * b_pad * sum(w.shape[0] * w.shape[1] for w in padded_ws)
    bytes_accessed = (
        x_p.size * x_p.dtype.itemsize
        + sum(w.size * w.dtype.itemsize for w in padded_ws)
        + sum(b.size * b.dtype.itemsize for b in padded_bs)
        + b_pad * out_p_last * 4
    )

    # VMEM budget (f32, tb=512, in0=16): 2x(512*16*4) + 2x(512*128*4) + ~0.2 MB of
    # weights  <<  v7x's 64 MiB, so the default scoped VMEM limit is plenty.
    out_padded = pl.pallas_call(
        kernel,
        out_shape=jax.ShapeDtypeStruct((b_pad, out_p_last), jnp.float32),
        grid_spec=pltpu.PrefetchScalarGridSpec(
            num_scalar_prefetch=0,
            grid=grid,
            in_specs=in_specs,
            out_specs=pl.BlockSpec((tb, out_p_last), lambda i: (i, 0)),
        ),
        compiler_params=pltpu.CompilerParams(
            # Batch tiles are independent -> megacore-shardable on v7x.
            dimension_semantics=("parallel",),
        ),
        cost_estimate=pl.CostEstimate(
            flops=flops, transcendentals=0, bytes_accessed=bytes_accessed),
    )(x_p, *padded_ws, *padded_bs)

    # Kernel stores a lane-dense [tb, 128] tile; slice back to the true logits here.
    return out_padded[:B, :num_classes]


def init_mlp_params(key, input_size, hidden_sizes, num_classes):
    """Deterministic init matching nn.Linear's U(-1/sqrt(fan_in), 1/sqrt(fan_in))."""
    sizes = [input_size] + list(hidden_sizes) + [num_classes]
    params = []
    for i in range(1, len(sizes)):
        fan_in, fan_out = sizes[i - 1], sizes[i]
        key, kw, kb = jax.random.split(key, 3)
        bound = 1.0 / jnp.sqrt(fan_in)
        # Store weight directly in [in, out] layout (transposed PyTorch weight).
        w_t = jax.random.uniform(kw, (fan_in, fan_out), jnp.float32, -bound, bound)
        b = jax.random.uniform(kb, (fan_out,), jnp.float32, -bound, bound)
        params.append((w_t, b))
    return params


if __name__ == "__main__":
    key = jax.random.PRNGKey(0)
    batch = 8
    input_size = 16
    num_classes = 4

    kx, kp = jax.random.split(key)
    x = jax.random.normal(kx, (batch, input_size), dtype=jnp.float32)
    params = init_mlp_params(kp, input_size, HIDDEN_SIZES, num_classes)

    # Pure-JAX f32 reference (same math as the PyTorch module).
    def ref_forward(ps, xs):
        out = xs
        for i, (w_t, b) in enumerate(ps):
            out = out @ w_t + b
            if i < len(ps) - 1:
                out = jnp.maximum(out, 0.0)
        return out

    ref = ref_forward(params, x)

    # 1) f32 fused kernel — matches PyTorch semantics exactly.
    logits = mlp_forward(params, x)
    jax.block_until_ready(logits)
    assert logits.shape == (batch, num_classes)
    assert jnp.allclose(logits, ref, atol=1e-5, rtol=1e-5)

    # 2) Exercise the batch-tiling path (grid > 1, ragged batch padded to the tile).
    x_big = jax.random.normal(jax.random.PRNGKey(1), (40, input_size), dtype=jnp.float32)
    logits_big = mlp_forward(params, x_big, block_batch=16)
    jax.block_until_ready(logits_big)
    assert logits_big.shape == (40, num_classes)
    assert jnp.allclose(logits_big, ref_forward(params, x_big), atol=1e-5, rtol=1e-5)

    # 3) bf16 matmul fast path (v6e/v7x MXU): bf16 inputs, f32 accumulation/bias/ReLU.
    logits_bf16 = mlp_forward(params, x, matmul_dtype=jnp.bfloat16)
    jax.block_until_ready(logits_bf16)
    assert logits_bf16.shape == (batch, num_classes)
    assert jnp.allclose(logits_bf16, ref, atol=5e-2, rtol=5e-2)

    print("KERNEL_OK")
</pallas_src>

<mosaic_0001>
module attributes {stable_mosaic.version = 11 : i64} {
  func.func @_fused_mlp_kernel(%arg0: i32, %arg1: memref<8x16xf32, #tpu.memory_space<vmem>>, %arg2: memref<16x128xf32, #tpu.memory_space<vmem>>, %arg3: memref<128x128xf32, #tpu.memory_space<vmem>>, %arg4: memref<128x128xf32, #tpu.memory_space<vmem>>, %arg5: memref<128x128xf32, #tpu.memory_space<vmem>>, %arg6: memref<1x128xf32, #tpu.memory_space<vmem>>, %arg7: memref<1x128xf32, #tpu.memory_space<vmem>>, %arg8: memref<1x128xf32, #tpu.memory_space<vmem>>, %arg9: memref<1x128xf32, #tpu.memory_space<vmem>>, %arg10: memref<8x128xf32, #tpu.memory_space<vmem>>) attributes {dimension_semantics = [#tpu.dimension_semantics<parallel>], iteration_bounds = array<i64: 1>, scalar_prefetch = 0 : i64, scratch_operands = 0 : i64, tpu.core_type = #tpu.core_type<tc>, window_params = [{transform_indices = @transform_0, window_bounds = array<i64: 8, 16>}, {pipeline_mode = #tpu.pipeline_mode<synchronous>, transform_indices = @transform_1, window_bounds = array<i64: 16, 128>}, {pipeline_mode = #tpu.pipeline_mode<synchronous>, transform_indices = @transform_2, window_bounds = array<i64: 128, 128>}, {pipeline_mode = #tpu.pipeline_mode<synchronous>, transform_indices = @transform_3, window_bounds = array<i64: 128, 128>}, {pipeline_mode = #tpu.pipeline_mode<synchronous>, transform_indices = @transform_4, window_bounds = array<i64: 128, 128>}, {pipeline_mode = #tpu.pipeline_mode<synchronous>, transform_indices = @transform_5, window_bounds = array<i64: 1, 128>}, {pipeline_mode = #tpu.pipeline_mode<synchronous>, transform_indices = @transform_6, window_bounds = array<i64: 1, 128>}, {pipeline_mode = #tpu.pipeline_mode<synchronous>, transform_indices = @transform_7, window_bounds = array<i64: 1, 128>}, {pipeline_mode = #tpu.pipeline_mode<synchronous>, transform_indices = @transform_8, window_bounds = array<i64: 1, 128>}, {transform_indices = @transform_9, window_bounds = array<i64: 8, 128>}]} {
    %c0 = arith.constant 0 : index
    %c0_0 = arith.constant 0 : index
    %0 = vector.load %arg1[%c0, %c0_0] : memref<8x16xf32, #tpu.memory_space<vmem>>, vector<8x16xf32>
    %c0_1 = arith.constant 0 : index
    %c0_2 = arith.constant 0 : index
    %1 = vector.load %arg2[%c0_1, %c0_2] : memref<16x128xf32, #tpu.memory_space<vmem>>, vector<16x128xf32>
    %cst = arith.constant dense<0.000000e+00> : vector<8x128xf32>
    %2 = tpu.matmul %0, %1, %cst {dimension_numbers = #tpu.dot_dimension_numbers<[1], [0], [0], [1], [0, 0, 1, 1], [], []>} : vector<8x16xf32>, vector<16x128xf32>, vector<8x128xf32> -> vector<8x128xf32>
    %c0_3 = arith.constant 0 : index
    %c0_4 = arith.constant 0 : index
    %3 = vector.load %arg6[%c0_3, %c0_4] : memref<1x128xf32, #tpu.memory_space<vmem>>, vector<1x128xf32>
    %4 = vector.broadcast %3 : vector<1x128xf32> to vector<8x128xf32>
    %5 = arith.addf %2, %4 : vector<8x128xf32>
    %cst_5 = arith.constant 0.000000e+00 : f32
    %6 = vector.broadcast %cst_5 : f32 to vector<8x128xf32>
    %7 = arith.maximumf %5, %6 : vector<8x128xf32>
    %c0_6 = arith.constant 0 : index
    %c0_7 = arith.constant 0 : index
    %8 = vector.load %arg3[%c0_6, %c0_7] : memref<128x128xf32, #tpu.memory_space<vmem>>, vector<128x128xf32>
    %cst_8 = arith.constant dense<0.000000e+00> : vector<8x128xf32>
    %9 = tpu.matmul %7, %8, %cst_8 {dimension_numbers = #tpu.dot_dimension_numbers<[1], [0], [0], [1], [0, 0, 1, 1], [], []>} : vector<8x128xf32>, vector<128x128xf32>, vector<8x128xf32> -> vector<8x128xf32>
    %c0_9 = arith.constant 0 : index
    %c0_10 = arith.constant 0 : index
    %10 = vector.load %arg7[%c0_9, %c0_10] : memref<1x128xf32, #tpu.memory_space<vmem>>, vector<1x128xf32>
    %11 = vector.broadcast %10 : vector<1x128xf32> to vector<8x128xf32>
    %12 = arith.addf %9, %11 : vector<8x128xf32>
    %cst_11 = arith.constant 0.000000e+00 : f32
    %13 = vector.broadcast %cst_11 : f32 to vector<8x128xf32>
    %14 = arith.maximumf %12, %13 : vector<8x128xf32>
    %c0_12 = arith.constant 0 : index
    %c0_13 = arith.constant 0 : index
    %15 = vector.load %arg4[%c0_12, %c0_13] : memref<128x128xf32, #tpu.memory_space<vmem>>, vector<128x128xf32>
    %cst_14 = arith.constant dense<0.000000e+00> : vector<8x128xf32>
    %16 = tpu.matmul %14, %15, %cst_14 {dimension_numbers = #tpu.dot_dimension_numbers<[1], [0], [0], [1], [0, 0, 1, 1], [], []>} : vector<8x128xf32>, vector<128x128xf32>, vector<8x128xf32> -> vector<8x128xf32>
    %c0_15 = arith.constant 0 : index
    %c0_16 = arith.constant 0 : index
    %17 = vector.load %arg8[%c0_15, %c0_16] : memref<1x128xf32, #tpu.memory_space<vmem>>, vector<1x128xf32>
    %18 = vector.broadcast %17 : vector<1x128xf32> to vector<8x128xf32>
    %19 = arith.addf %16, %18 : vector<8x128xf32>
    %cst_17 = arith.constant 0.000000e+00 : f32
    %20 = vector.broadcast %cst_17 : f32 to vector<8x128xf32>
    %21 = arith.maximumf %19, %20 : vector<8x128xf32>
    %c0_18 = arith.constant 0 : index
    %c0_19 = arith.constant 0 : index
    %22 = vector.load %arg5[%c0_18, %c0_19] : memref<128x128xf32, #tpu.memory_space<vmem>>, vector<128x128xf32>
    %cst_20 = arith.constant dense<0.000000e+00> : vector<8x128xf32>
    %23 = tpu.matmul %21, %22, %cst_20 {dimension_numbers = #tpu.dot_dimension_numbers<[1], [0], [0], [1], [0, 0, 1, 1], [], []>} : vector<8x128xf32>, vector<128x128xf32>, vector<8x128xf32> -> vector<8x128xf32>
    %c0_21 = arith.constant 0 : index
    %c0_22 = arith.constant 0 : index
    %24 = vector.load %arg9[%c0_21, %c0_22] : memref<1x128xf32, #tpu.memory_space<vmem>>, vector<1x128xf32>
    %25 = vector.broadcast %24 : vector<1x128xf32> to vector<8x128xf32>
    %26 = arith.addf %23, %25 : vector<8x128xf32>
    %c0_23 = arith.constant 0 : index
    %c0_24 = arith.constant 0 : index
    %27 = vector.load %arg10[%c0_23, %c0_24] : memref<8x128xf32, #tpu.memory_space<vmem>>, vector<8x128xf32>
    tpu.vector_store %arg10[%c0_23, %c0_24], %26 {strides = array<i32>} : memref<8x128xf32, #tpu.memory_space<vmem>>, vector<8x128xf32>,
    return
  }
  func.func @transform_0(%arg0: i32) -> (i32, i32) {
    %c0_i32 = arith.constant 0 : i32
    %c0_i32_0 = arith.constant 0 : i32
    return %arg0, %c0_i32 : i32, i32
  }
  func.func @transform_1(%arg0: i32) -> (i32, i32) {
    %c0_i32 = arith.constant 0 : i32
    %c0_i32_0 = arith.constant 0 : i32
    %c0_i32_1 = arith.constant 0 : i32
    return %c0_i32, %c0_i32_0 : i32, i32
  }
  func.func @transform_2(%arg0: i32) -> (i32, i32) {
    %c0_i32 = arith.constant 0 : i32
    %c0_i32_0 = arith.constant 0 : i32
    %c0_i32_1 = arith.constant 0 : i32
    return %c0_i32, %c0_i32_0 : i32, i32
  }
  func.func @transform_3(%arg0: i32) -> (i32, i32) {
    %c0_i32 = arith.constant 0 : i32
    %c0_i32_0 = arith.constant 0 : i32
    %c0_i32_1 = arith.constant 0 : i32
    return %c0_i32, %c0_i32_0 : i32, i32
  }
  func.func @transform_4(%arg0: i32) -> (i32, i32) {
    %c0_i32 = arith.constant 0 : i32
    %c0_i32_0 = arith.constant 0 : i32
    %c0_i32_1 = arith.constant 0 : i32
    return %c0_i32, %c0_i32_0 : i32, i32
  }
  func.func @transform_5(%arg0: i32) -> (i32, i32) {
    %c0_i32 = arith.constant 0 : i32
    %c0_i32_0 = arith.constant 0 : i32
    %c0_i32_1 = arith.constant 0 : i32
    return %c0_i32, %c0_i32_0 : i32, i32
  }
  func.func @transform_6(%arg0: i32) -> (i32, i32) {
    %c0_i32 = arith.constant 0 : i32
    %c0_i32_0 = arith.constant 0 : i32
    %c0_i32_1 = arith.constant 0 : i32
    return %c0_i32, %c0_i32_0 : i32, i32
  }
  func.func @transform_7(%arg0: i32) -> (i32, i32) {
    %c0_i32 = arith.constant 0 : i32
    %c0_i32_0 = arith.constant 0 : i32
    %c0_i32_1 = arith.constant 0 : i32
    return %c0_i32, %c0_i32_0 : i32, i32
  }
  func.func @transform_8(%arg0: i32) -> (i32, i32) {
    %c0_i32 = arith.constant 0 : i32
    %c0_i32_0 = arith.constant 0 : i32
    %c0_i32_1 = arith.constant 0 : i32
    return %c0_i32, %c0_i32_0 : i32, i32
  }
  func.func @transform_9(%arg0: i32) -> (i32, i32) {
    %c0_i32 = arith.constant 0 : i32
    %c0_i32_0 = arith.constant 0 : i32
    return %arg0, %c0_i32 : i32, i32
  }
}

</mosaic_0001>

<llo_original>
// kernel: tpu_custom_call.1
$region0: #{tpu_custom_call.1}
  #allocation0 [shape = 'u32[]', space=smem, size = 0x4, offset = 0x4, fixed_abs, tag = 'smem constant byte address 0x4 - core index']
  #allocation1 [shape = 'u32[144,128]{1,0:T(1,128)}', space=vmem, size = 0x12000, scoped, tag = 'internal scratch']
  %s0 = inlined_call_operand.hbm [shape: f32[8,16], index: 0, kind: input, shape index: {}]
  %s1 = inlined_call_operand.hbm [shape: f32[16,128], index: 1, kind: input, shape index: {}]
  %s2 = inlined_call_operand.hbm [shape: f32[128,128], index: 2, kind: input, shape index: {}]
  %s3 = inlined_call_operand.hbm [shape: f32[128,128], index: 3, kind: input, shape index: {}]
  %s4 = inlined_call_operand.hbm [shape: f32[128,128], index: 4, kind: input, shape index: {}]
  %s5 = inlined_call_operand.vmem [shape: f32[1,128], index: 5, kind: input, shape index: {}]
  %s6 = inlined_call_operand.vmem [shape: f32[1,128], index: 6, kind: input, shape index: {}]
  %s7 = inlined_call_operand.vmem [shape: f32[1,128], index: 7, kind: input, shape index: {}]
  %s8 = inlined_call_operand.vmem [shape: f32[1,128], index: 8, kind: input, shape index: {}]
  %s9 = inlined_call_operand.hbm [shape: f32[8,128], index: 9, kind: output, shape index: {}]
  %s10 = sld [smem:[#allocation0]]
  $region66: #{tpu_custom_call.1} parent=0
    _
  %s12 = ssub.s32 1, %s10
  %s13 = scalar_select 0, %s12, %s10
  $region1: #{tpu_custom_call.1} parent=0
    #allocation2 [shape = 'u8[4096]{0}', space=vmem, size = 0x1000, scoped, tag = 'input window, operand 0, single buffered']
    #allocation3 [shape = 's32[1]{0}', space=sflag, size = 0x4, scoped, tag = 'scoped memory for tpu_custom_call.1']
    #allocation4 [shape = 's32[1]{0}', space=sflag, size = 0x4, scoped, tag = 'scoped memory for tpu_custom_call.1']
    #allocation5 [shape = 'u8[8192]{0}', space=vmem, size = 0x2000, scoped, tag = 'input window, operand 1, single buffered']
    #allocation6 [shape = 's32[1]{0}', space=sflag, size = 0x4, scoped, tag = 'scoped memory for tpu_custom_call.1']
    #allocation7 [shape = 'u8[65536]{0}', space=vmem, size = 0x10000, scoped, tag = 'input window, operand 2, single buffered']
    #allocation8 [shape = 'u8[65536]{0}', space=vmem, size = 0x10000, scoped, tag = 'input window, operand 3, single buffered']
    #allocation9 [shape = 's32[1]{0}', space=sflag, size = 0x4, scoped, tag = 'scoped memory for tpu_custom_call.1']
    #allocation10 [shape = 'u8[65536]{0}', space=vmem, size = 0x10000, scoped, tag = 'input window, operand 4, single buffered']
    #allocation11 [shape = 'u8[4096]{0}', space=vmem, size = 0x1000, scoped, tag = 'output window, operand 0, single buffered']
    %14 = vsyncpa [#allocation3], 0
    %15 = vsyncpa [#allocation6], 0
    %16 = vsyncpa [#allocation9], 0
    %17 = vsyncpa [#allocation4], 0
    // Predicated region
    $region2: #{tpu_custom_call.1} parent=1 // pred_check
      _
    $region3: #{tpu_custom_call.1} parent=1 // pred_check_branch
      %19 = sbr.rel (0) target = $region5
    $region4: #{tpu_custom_call.1} parent=1 // pred_region
      %s21 = ssub.s32 128, 128
      %22 = vsyncadd [#allocation3], %s21
      %s24 = sshll.u32 [#allocation2], 4
      %s25 = int_to_ptr.vmem [resolvable:$true] %s24
      %27 = dma.hbm_to_vmem [thread:$0]  %s0, 128, %s25, [#allocation3]
    $region5: #{tpu_custom_call.1} parent=1 // pred_fallthru
      _
    // Predicated region
    $region6: #{tpu_custom_call.1} parent=1 // pred_check
      _
    $region7: #{tpu_custom_call.1} parent=1 // pred_check_branch
      %29 = sbr.rel (0) target = $region9
    $region8: #{tpu_custom_call.1} parent=1 // pred_region
      %s31 = ssub.s32 256, 256
      %32 = vsyncadd [#allocation6], %s31
      %s33 = sshll.u32 [#allocation5], 4
      %s34 = int_to_ptr.vmem [resolvable:$true] %s33
      %39 = dma.hbm_to_vmem [thread:$0]  %s1, 256, %s34, [#allocation6], 128, 128, 8
    $region9: #{tpu_custom_call.1} parent=1 // pred_fallthru
      _
    // Predicated region
    $region10: #{tpu_custom_call.1} parent=1 // pred_check
      _
    $region11: #{tpu_custom_call.1} parent=1 // pred_check_branch
      %41 = sbr.rel (0) target = $region13
    $region12: #{tpu_custom_call.1} parent=1 // pred_region
      %s43 = ssub.s32 2048, 2048
      %44 = vsyncadd [#allocation6], %s43
      %s45 = sshll.u32 [#allocation7], 4
      %s46 = int_to_ptr.vmem [resolvable:$true] %s45
      %51 = dma.hbm_to_vmem [thread:$0]  %s2, 2048, %s46, [#allocation6], 128, 128, 8
    $region13: #{tpu_custom_call.1} parent=1 // pred_fallthru
      _
    // Predicated region
    $region14: #{tpu_custom_call.1} parent=1 // pred_check
      _
    $region15: #{tpu_custom_call.1} parent=1 // pred_check_branch
      %53 = sbr.rel (0) target = $region17
    $region16: #{tpu_custom_call.1} parent=1 // pred_region
      %s55 = ssub.s32 2048, 2048
      %56 = vsyncadd [#allocation9], %s55
      %s57 = sshll.u32 [#allocation8], 4
      %s58 = int_to_ptr.vmem [resolvable:$true] %s57
      %63 = dma.hbm_to_vmem [thread:$0]  %s3, 2048, %s58, [#allocation9], 128, 128, 8
    $region17: #{tpu_custom_call.1} parent=1 // pred_fallthru
      _
    // Predicated region
    $region18: #{tpu_custom_call.1} parent=1 // pred_check
      _
    $region19: #{tpu_custom_call.1} parent=1 // pred_check_branch
      %65 = sbr.rel (0) target = $region21
    $region20: #{tpu_custom_call.1} parent=1 // pred_region
      %s67 = ssub.s32 2048, 2048
      %68 = vsyncadd [#allocation9], %s67
      %s69 = sshll.u32 [#allocation10], 4
      %s70 = int_to_ptr.vmem [resolvable:$true] %s69
      %75 = dma.hbm_to_vmem [thread:$0]  %s4, 2048, %s70, [#allocation9], 128, 128, 8
    $region21: #{tpu_custom_call.1} parent=1 // pred_fallthru
      _
    // Predicated region
    $region22: #{tpu_custom_call.1} parent=1 // pred_check
      _
    $region23: #{tpu_custom_call.1} parent=1 // pred_check_branch
      %77 = sbr.rel (0) target = $region25
    $region24: #{tpu_custom_call.1} parent=1 // pred_region
      _
    $region25: #{tpu_custom_call.1} parent=1 // pred_fallthru
      _
    // Predicated region
    $region26: #{tpu_custom_call.1} parent=1 // pred_check
      _
    $region27: #{tpu_custom_call.1} parent=1 // pred_check_branch
      %79 = sbr.rel (0) target = $region29
    $region28: #{tpu_custom_call.1} parent=1 // pred_region
      _
    $region29: #{tpu_custom_call.1} parent=1 // pred_fallthru
      _
    // Predicated region
    $region30: #{tpu_custom_call.1} parent=1 // pred_check
      _
    $region31: #{tpu_custom_call.1} parent=1 // pred_check_branch
      %81 = sbr.rel (0) target = $region33
    $region32: #{tpu_custom_call.1} parent=1 // pred_region
      _
    $region33: #{tpu_custom_call.1} parent=1 // pred_fallthru
      _
    // Predicated region
    $region34: #{tpu_custom_call.1} parent=1 // pred_check
      _
    $region35: #{tpu_custom_call.1} parent=1 // pred_check_branch
      %83 = sbr.rel (0) target = $region37
    $region36: #{tpu_custom_call.1} parent=1 // pred_region
      _
    $region37: #{tpu_custom_call.1} parent=1 // pred_fallthru
      _
    // Predicated region
    $region38: #{tpu_custom_call.1} parent=1 // pred_check
      _
    $region39: #{tpu_custom_call.1} parent=1 // pred_check_branch
      %85 = sbr.rel (0) target = $region41
    $region40: #{tpu_custom_call.1} parent=1 // pred_region
      %86 = dma.done [#allocation3], 128
    $region41: #{tpu_custom_call.1} parent=1 // pred_fallthru
      _
    // Predicated region
    $region42: #{tpu_custom_call.1} parent=1 // pred_check
      _
    $region43: #{tpu_custom_call.1} parent=1 // pred_check_branch
      %88 = sbr.rel (0) target = $region45
    $region44: #{tpu_custom_call.1} parent=1 // pred_region
      %89 = dma.done [#allocation6], 256
    $region45: #{tpu_custom_call.1} parent=1 // pred_fallthru
      _
    // Predicated region
    $region46: #{tpu_custom_call.1} parent=1 // pred_check
      _
    $region47: #{tpu_custom_call.1} parent=1 // pred_check_branch
      %91 = sbr.rel (0) target = $region49
    $region48: #{tpu_custom_call.1} parent=1 // pred_region
      %92 = dma.done [#allocation6], 2048
    $region49: #{tpu_custom_call.1} parent=1 // pred_fallthru
      _
    // Predicated region
    $region50: #{tpu_custom_call.1} parent=1 // pred_check
      _
    $region51: #{tpu_custom_call.1} parent=1 // pred_check_branch
      %94 = sbr.rel (0) target = $region53
    $region52: #{tpu_custom_call.1} parent=1 // pred_region
      %95 = dma.done [#allocation9], 2048
    $region53: #{tpu_custom_call.1} parent=1 // pred_fallthru
      _
    // Predicated region
    $region54: #{tpu_custom_call.1} parent=1 // pred_check
      _
    $region55: #{tpu_custom_call.1} parent=1 // pred_check_branch
      %97 = sbr.rel (0) target = $region57
    $region56: #{tpu_custom_call.1} parent=1 // pred_region
      %98 = dma.done [#allocation9], 2048
    $region57: #{tpu_custom_call.1} parent=1 // pred_fallthru
      _
    %v99 = vld [vmem:[#allocation2] sm:$0xff]
    %v100 = vld [vmem:[#allocation5] sm:$0xff]
    %v101 = vld [vmem:[#allocation5 + $0x8] sm:$0xff]
    %v102 = vld [vmem:[%s5] sm:$0x1]
    %v104 = vlaneseq
    %v105 = vshrl.u32 %v104, 7
    %v106 = vsub.s32 0, %v105
    %v107 = vrot.slane %v102, %v106
    %vm109 = vcmask 130048
    %v111 = vsel %vm109, %v99, 0
    %113 = vmatprep.subr.mxu0 0.0
    %114 = vmatpush1.msra.mxu0 %v100
    %115 = vmatprep.subr.mxu0 0.0
    %116 = vmatpush1.msra.mxu0 %v101
    %117 = vmatprep.subr.mxu0 0.0
    %118 = vmatpush1.msra.mxu0 0.0
    %119 = vmatprep.subr.mxu0 0.0
    %120 = vmatpush1.msra.mxu0 0.0
    %121 = vmatprep.subr.mxu0 0.0
    %122 = vmatpush1.msra.mxu0 0.0
    %123 = vmatprep.subr.mxu0 0.0
    %124 = vmatpush1.msra.mxu0 0.0
    %125 = vmatprep.subr.mxu0 0.0
    %126 = vmatpush1.msra.mxu0 0.0
    %127 = vmatprep.subr.mxu0 0.0
    %128 = vmatpush1.msra.mxu0 0.0
    %129 = vmatprep.subr.mxu0 0.0
    %130 = vmatpush1.msra.mxu0 0.0
    %131 = vmatprep.subr.mxu0 0.0
    %132 = vmatpush1.msra.mxu0 0.0
    %133 = vmatprep.subr.mxu0 0.0
    %134 = vmatpush1.msra.mxu0 0.0
    %135 = vmatprep.subr.mxu0 0.0
    %136 = vmatpush1.msra.mxu0 0.0
    %137 = vmatprep.subr.mxu0 0.0
    %138 = vmatpush1.msra.mxu0 0.0
    %139 = vmatprep.subr.mxu0 0.0
    %140 = vmatpush1.msra.mxu0 0.0
    %141 = vmatprep.subr.mxu0 0.0
    %142 = vmatpush1.msra.mxu0 0.0
    %143 = vmatprep.subr.mxu0 0.0
    %144 = vmatpush1.msra.mxu0 0.0
    %145 = vmatprep.subr.mxu0 0.0
    %146 = vmatpush1.msra.mxu0 0.0
    %147 = vmatprep.subr.mxu0 0.0
    %148 = vmatpush1.msra.mxu0 0.0
    %149 = vmatprep.subr.mxu0 0.0
    %150 = vmatpush1.msra.mxu0 0.0
    %151 = vmatprep.subr.mxu0 0.0
    %152 = vmatpush1.msra.mxu0 0.0
    %153 = vmatprep.subr.mxu0 0.0
    %154 = vmatpush1.msra.mxu0 0.0
    %155 = vmatprep.subr.mxu0 0.0
    %156 = vmatpush1.msra.mxu0 0.0
    %157 = vmatprep.subr.mxu0 0.0
    %158 = vmatpush1.msra.mxu0 0.0
    %159 = vmatprep.subr.mxu0 0.0
    %160 = vmatpush1.msra.mxu0 0.0
    %161 = vmatprep.subr.mxu0 0.0
    %162 = vmatpush1.msra.mxu0 0.0
    %163 = vmatprep.subr.mxu0 0.0
    %164 = vmatpush1.msra.mxu0 0.0
    %165 = vmatprep.subr.mxu0 0.0
    %166 = vmatpush1.msra.mxu0 0.0
    %167 = vmatprep.subr.mxu0 0.0
    %168 = vmatpush1.msra.mxu0 0.0
    %169 = vmatprep.subr.mxu0 0.0
    %170 = vmatpush1.msra.mxu0 0.0
    %171 = vmatprep.subr.mxu0 0.0
    %172 = vmatpush1.msra.mxu0 0.0
    %173 = vmatprep.subr.mxu0 0.0
    %174 = vmatpush1.msra.mxu0 0.0
    %175 = vmatprep.subr.mxu0 0.0
    %176 = vmatpush1.msra.mxu0 0.0
    %177 = vmatprep.mubr.f32.mxu0 0.0
    %178 = vmatmul.mubr.f32.gmra.mrb[0].mxu0 %v111
    %v179 = vpop.f32.mrb[0].mxu0
    %v180 = vadd.f32 %v107, %v179
    %v181 = vpop.f32.mrb[0].mxu0
    %182 = vdwg.mxu0
    %v183 = vmax.f32 %v180, 0.0
    %v184 = vld [vmem:[#allocation7] sm:$0xff]
    %v185 = vld [vmem:[#allocation7 + $0x8] sm:$0xff]
    %v186 = vld [vmem:[#allocation7 + $0x10] sm:$0xff]
    %v187 = vld [vmem:[#allocation7 + $0x18] sm:$0xff]
    %v188 = vld [vmem:[#allocation7 + $0x20] sm:$0xff]
    %v189 = vld [vmem:[#allocation7 + $0x28] sm:$0xff]
    %v190 = vld [vmem:[#allocation7 + $0x30] sm:$0xff]
    %v191 = vld [vmem:[#allocation7 + $0x38] sm:$0xff]
    %v192 = vld [vmem:[#allocation7 + $0x40] sm:$0xff]
    %v193 = vld [vmem:[#allocation7 + $0x48] sm:$0xff]
    %v194 = vld [vmem:[#allocation7 + $0x50] sm:$0xff]
    %v195 = vld [vmem:[#allocation7 + $0x58] sm:$0xff]
    %v196 = vld [vmem:[#allocation7 + $0x60] sm:$0xff]
    %v197 = vld [vmem:[#allocation7 + $0x68] sm:$0xff]
    %v198 = vld [vmem:[#allocation7 + $0x70] sm:$0xff]
    %v199 = vld [vmem:[#allocation7 + $0x78] sm:$0xff]
    %v200 = vld [vmem:[%s6] sm:$0x1]
    %v202 = vlaneseq
    %v203 = vshrl.u32 %v202, 7
    %v204 = vsub.s32 0, %v203
    %v205 = vrot.slane %v200, %v204
    %207 = vmatprep.subr.mxu0 0.0
    %208 = vmatpush1.msra.mxu0 %v184
    %209 = vmatprep.subr.mxu0 0.0
    %210 = vmatpush1.msra.mxu0 %v185
    %211 = vmatprep.subr.mxu0 0.0
    %212 = vmatpush1.msra.mxu0 %v186
    %213 = vmatprep.subr.mxu0 0.0
    %214 = vmatpush1.msra.mxu0 %v187
    %215 = vmatprep.subr.mxu0 0.0
    %216 = vmatpush1.msra.mxu0 %v188
    %217 = vmatprep.subr.mxu0 0.0
    %218 = vmatpush1.msra.mxu0 %v189
    %219 = vmatprep.subr.mxu0 0.0
    %220 = vmatpush1.msra.mxu0 %v190
    %221 = vmatprep.subr.mxu0 0.0
    %222 = vmatpush1.msra.mxu0 %v191
    %223 = vmatprep.subr.mxu0 0.0
    %224 = vmatpush1.msra.mxu0 %v192
    %225 = vmatprep.subr.mxu0 0.0
    %226 = vmatpush1.msra.mxu0 %v193
    %227 = vmatprep.subr.mxu0 0.0
    %228 = vmatpush1.msra.mxu0 %v194
    %229 = vmatprep.subr.mxu0 0.0
    %230 = vmatpush1.msra.mxu0 %v195
    %231 = vmatprep.subr.mxu0 0.0
    %232 = vmatpush1.msra.mxu0 %v196
    %233 = vmatprep.subr.mxu0 0.0
    %234 = vmatpush1.msra.mxu0 %v197
    %235 = vmatprep.subr.mxu0 0.0
    %236 = vmatpush1.msra.mxu0 %v198
    %237 = vmatprep.subr.mxu0 0.0
    %238 = vmatpush1.msra.mxu0 %v199
    %239 = vmatprep.subr.mxu0 0.0
    %240 = vmatpush1.msra.mxu0 0.0
    %241 = vmatprep.subr.mxu0 0.0
    %242 = vmatpush1.msra.mxu0 0.0
    %243 = vmatprep.subr.mxu0 0.0
    %244 = vmatpush1.msra.mxu0 0.0
    %245 = vmatprep.subr.mxu0 0.0
    %246 = vmatpush1.msra.mxu0 0.0
    %247 = vmatprep.subr.mxu0 0.0
    %248 = vmatpush1.msra.mxu0 0.0
    %249 = vmatprep.subr.mxu0 0.0
    %250 = vmatpush1.msra.mxu0 0.0
    %251 = vmatprep.subr.mxu0 0.0
    %252 = vmatpush1.msra.mxu0 0.0
    %253 = vmatprep.subr.mxu0 0.0
    %254 = vmatpush1.msra.mxu0 0.0
    %255 = vmatprep.subr.mxu0 0.0
    %256 = vmatpush1.msra.mxu0 0.0
    %257 = vmatprep.subr.mxu0 0.0
    %258 = vmatpush1.msra.mxu0 0.0
    %259 = vmatprep.subr.mxu0 0.0
    %260 = vmatpush1.msra.mxu0 0.0
    %261 = vmatprep.subr.mxu0 0.0
    %262 = vmatpush1.msra.mxu0 0.0
    %263 = vmatprep.subr.mxu0 0.0
    %264 = vmatpush1.msra.mxu0 0.0
    %265 = vmatprep.subr.mxu0 0.0
    %266 = vmatpush1.msra.mxu0 0.0
    %267 = vmatprep.subr.mxu0 0.0
    %268 = vmatpush1.msra.mxu0 0.0
    %269 = vmatprep.subr.mxu0 0.0
    %270 = vmatpush1.msra.mxu0 0.0
    %271 = vmatprep.mubr.f32.mxu0 0.0
    %272 = vmatmul.mubr.f32.gmra.mrb[0].mxu0 %v183
    %v273 = vpop.f32.mrb[0].mxu0
    %v274 = vadd.f32 %v205, %v273
    %v275 = vpop.f32.mrb[0].mxu0
    %276 = vdwg.mxu0
    %v277 = vmax.f32 %v274, 0.0
    %v278 = vld [vmem:[#allocation8] sm:$0xff]
    %v279 = vld [vmem:[#allocation8 + $0x8] sm:$0xff]
    %v280 = vld [vmem:[#allocation8 + $0x10] sm:$0xff]
    %v281 = vld [vmem:[#allocation8 + $0x18] sm:$0xff]
    %v282 = vld [vmem:[#allocation8 + $0x20] sm:$0xff]
    %v283 = vld [vmem:[#allocation8 + $0x28] sm:$0xff]
    %v284 = vld [vmem:[#allocation8 + $0x30] sm:$0xff]
    %v285 = vld [vmem:[#allocation8 + $0x38] sm:$0xff]
    %v286 = vld [vmem:[#allocation8 + $0x40] sm:$0xff]
    %v287 = vld [vmem:[#allocation8 + $0x48] sm:$0xff]
    %v288 = vld [vmem:[#allocation8 + $0x50] sm:$0xff]
    %v289 = vld [vmem:[#allocation8 + $0x58] sm:$0xff]
    %v290 = vld [vmem:[#allocation8 + $0x60] sm:$0xff]
    %v291 = vld [vmem:[#allocation8 + $0x68] sm:$0xff]
    %v292 = vld [vmem:[#allocation8 + $0x70] sm:$0xff]
    %v293 = vld [vmem:[#allocation8 + $0x78] sm:$0xff]
    %v294 = vld [vmem:[%s7] sm:$0x1]
    %v296 = vlaneseq
    %v297 = vshrl.u32 %v296, 7
    %v298 = vsub.s32 0, %v297
    %v299 = vrot.slane %v294, %v298
    %301 = vmatprep.subr.mxu0 0.0
    %302 = vmatpush1.msra.mxu0 %v278
    %303 = vmatprep.subr.mxu0 0.0
    %304 = vmatpush1.msra.mxu0 %v279
    %305 = vmatprep.subr.mxu0 0.0
    %306 = vmatpush1.msra.mxu0 %v280
    %307 = vmatprep.subr.mxu0 0.0
    %308 = vmatpush1.msra.mxu0 %v281
    %309 = vmatprep.subr.mxu0 0.0
    %310 = vmatpush1.msra.mxu0 %v282
    %311 = vmatprep.subr.mxu0 0.0
    %312 = vmatpush1.msra.mxu0 %v283
    %313 = vmatprep.subr.mxu0 0.0
    %314 = vmatpush1.msra.mxu0 %v284
    %315 = vmatprep.subr.mxu0 0.0
    %316 = vmatpush1.msra.mxu0 %v285
    %317 = vmatprep.subr.mxu0 0.0
    %318 = vmatpush1.msra.mxu0 %v286
    %319 = vmatprep.subr.mxu0 0.0
    %320 = vmatpush1.msra.mxu0 %v287
    %321 = vmatprep.subr.mxu0 0.0
    %322 = vmatpush1.msra.mxu0 %v288
    %323 = vmatprep.subr.mxu0 0.0
    %324 = vmatpush1.msra.mxu0 %v289
    %325 = vmatprep.subr.mxu0 0.0
    %326 = vmatpush1.msra.mxu0 %v290
    %327 = vmatprep.subr.mxu0 0.0
    %328 = vmatpush1.msra.mxu0 %v291
    %329 = vmatprep.subr.mxu0 0.0
    %330 = vmatpush1.msra.mxu0 %v292
    %331 = vmatprep.subr.mxu0 0.0
    %332 = vmatpush1.msra.mxu0 %v293
    %333 = vmatprep.subr.mxu0 0.0
    %334 = vmatpush1.msra.mxu0 0.0
    %335 = vmatprep.subr.mxu0 0.0
    %336 = vmatpush1.msra.mxu0 0.0
    %337 = vmatprep.subr.mxu0 0.0
    %338 = vmatpush1.msra.mxu0 0.0
    %339 = vmatprep.subr.mxu0 0.0
    %340 = vmatpush1.msra.mxu0 0.0
    %341 = vmatprep.subr.mxu0 0.0
    %342 = vmatpush1.msra.mxu0 0.0
    %343 = vmatprep.subr.mxu0 0.0
    %344 = vmatpush1.msra.mxu0 0.0
    %345 = vmatprep.subr.mxu0 0.0
    %346 = vmatpush1.msra.mxu0 0.0
    %347 = vmatprep.subr.mxu0 0.0
    %348 = vmatpush1.msra.mxu0 0.0
    %349 = vmatprep.subr.mxu0 0.0
    %350 = vmatpush1.msra.mxu0 0.0
    %351 = vmatprep.subr.mxu0 0.0
    %352 = vmatpush1.msra.mxu0 0.0
    %353 = vmatprep.subr.mxu0 0.0
    %354 = vmatpush1.msra.mxu0 0.0
    %355 = vmatprep.subr.mxu0 0.0
    %356 = vmatpush1.msra.mxu0 0.0
    %357 = vmatprep.subr.mxu0 0.0
    %358 = vmatpush1.msra.mxu0 0.0
    %359 = vmatprep.subr.mxu0 0.0
    %360 = vmatpush1.msra.mxu0 0.0
    %361 = vmatprep.subr.mxu0 0.0
    %362 = vmatpush1.msra.mxu0 0.0
    %363 = vmatprep.subr.mxu0 0.0
    %364 = vmatpush1.msra.mxu0 0.0
    %365 = vmatprep.mubr.f32.mxu0 0.0
    %366 = vmatmul.mubr.f32.gmra.mrb[0].mxu0 %v277
    %v367 = vpop.f32.mrb[0].mxu0
    %v368 = vadd.f32 %v299, %v367
    %v369 = vpop.f32.mrb[0].mxu0
    %370 = vdwg.mxu0
    %v371 = vmax.f32 %v368, 0.0
    %v372 = vld [vmem:[#allocation10] sm:$0xff]
    %v373 = vld [vmem:[#allocation10 + $0x8] sm:$0xff]
    %v374 = vld [vmem:[#allocation10 + $0x10] sm:$0xff]
    %v375 = vld [vmem:[#allocation10 + $0x18] sm:$0xff]
    %v376 = vld [vmem:[#allocation10 + $0x20] sm:$0xff]
    %v377 = vld [vmem:[#allocation10 + $0x28] sm:$0xff]
    %v378 = vld [vmem:[#allocation10 + $0x30] sm:$0xff]
    %v379 = vld [vmem:[#allocation10 + $0x38] sm:$0xff]
    %v380 = vld [vmem:[#allocation10 + $0x40] sm:$0xff]
    %v381 = vld [vmem:[#allocation10 + $0x48] sm:$0xff]
    %v382 = vld [vmem:[#allocation10 + $0x50] sm:$0xff]
    %v383 = vld [vmem:[#allocation10 + $0x58] sm:$0xff]
    %v384 = vld [vmem:[#allocation10 + $0x60] sm:$0xff]
    %v385 = vld [vmem:[#allocation10 + $0x68] sm:$0xff]
    %v386 = vld [vmem:[#allocation10 + $0x70] sm:$0xff]
    %v387 = vld [vmem:[#allocation10 + $0x78] sm:$0xff]
    %v388 = vld [vmem:[%s8] sm:$0x1]
    %v390 = vlaneseq
    %v391 = vshrl.u32 %v390, 7
    %v392 = vsub.s32 0, %v391
    %v393 = vrot.slane %v388, %v392
    %395 = vmatprep.subr.mxu0 0.0
    %396 = vmatpush1.msra.mxu0 %v372
    %397 = vmatprep.subr.mxu0 0.0
    %398 = vmatpush1.msra.mxu0 %v373
    %399 = vmatprep.subr.mxu0 0.0
    %400 = vmatpush1.msra.mxu0 %v374
    %401 = vmatprep.subr.mxu0 0.0
    %402 = vmatpush1.msra.mxu0 %v375
    %403 = vmatprep.subr.mxu0 0.0
    %404 = vmatpush1.msra.mxu0 %v376
    %405 = vmatprep.subr.mxu0 0.0
    %406 = vmatpush1.msra.mxu0 %v377
    %407 = vmatprep.subr.mxu0 0.0
    %408 = vmatpush1.msra.mxu0 %v378
    %409 = vmatprep.subr.mxu0 0.0
    %410 = vmatpush1.msra.mxu0 %v379
    %411 = vmatprep.subr.mxu0 0.0
    %412 = vmatpush1.msra.mxu0 %v380
    %413 = vmatprep.subr.mxu0 0.0
    %414 = vmatpush1.msra.mxu0 %v381
    %415 = vmatprep.subr.mxu0 0.0
    %416 = vmatpush1.msra.mxu0 %v382
    %417 = vmatprep.subr.mxu0 0.0
    %418 = vmatpush1.msra.mxu0 %v383
    %419 = vmatprep.subr.mxu0 0.0
    %420 = vmatpush1.msra.mxu0 %v384
    %421 = vmatprep.subr.mxu0 0.0
    %422 = vmatpush1.msra.mxu0 %v385
    %423 = vmatprep.subr.mxu0 0.0
    %424 = vmatpush1.msra.mxu0 %v386
    %425 = vmatprep.subr.mxu0 0.0
    %426 = vmatpush1.msra.mxu0 %v387
    %427 = vmatprep.subr.mxu0 0.0
    %428 = vmatpush1.msra.mxu0 0.0
    %429 = vmatprep.subr.mxu0 0.0
    %430 = vmatpush1.msra.mxu0 0.0
    %431 = vmatprep.subr.mxu0 0.0
    %432 = vmatpush1.msra.mxu0 0.0
    %433 = vmatprep.subr.mxu0 0.0
    %434 = vmatpush1.msra.mxu0 0.0
    %435 = vmatprep.subr.mxu0 0.0
    %436 = vmatpush1.msra.mxu0 0.0
    %437 = vmatprep.subr.mxu0 0.0
    %438 = vmatpush1.msra.mxu0 0.0
    %439 = vmatprep.subr.mxu0 0.0
    %440 = vmatpush1.msra.mxu0 0.0
    %441 = vmatprep.subr.mxu0 0.0
    %442 = vmatpush1.msra.mxu0 0.0
    %443 = vmatprep.subr.mxu0 0.0
    %444 = vmatpush1.msra.mxu0 0.0
    %445 = vmatprep.subr.mxu0 0.0
    %446 = vmatpush1.msra.mxu0 0.0
    %447 = vmatprep.subr.mxu0 0.0
    %448 = vmatpush1.msra.mxu0 0.0
    %449 = vmatprep.subr.mxu0 0.0
    %450 = vmatpush1.msra.mxu0 0.0
    %451 = vmatprep.subr.mxu0 0.0
    %452 = vmatpush1.msra.mxu0 0.0
    %453 = vmatprep.subr.mxu0 0.0
    %454 = vmatpush1.msra.mxu0 0.0
    %455 = vmatprep.subr.mxu0 0.0
    %456 = vmatpush1.msra.mxu0 0.0
    %457 = vmatprep.subr.mxu0 0.0
    %458 = vmatpush1.msra.mxu0 0.0
    %459 = vmatprep.mubr.f32.mxu0 0.0
    %460 = vmatmul.mubr.f32.gmra.mrb[0].mxu0 %v371
    %v461 = vpop.f32.mrb[0].mxu0
    %v462 = vadd.f32 %v393, %v461
    %v463 = vpop.f32.mrb[0].mxu0
    %464 = vdwg.mxu0
    %465 = vst [vmem:[#allocation11] sm:$0xff] %v462
    // Predicated region
    $region58: #{tpu_custom_call.1} parent=1 // pred_check
      _
    $region59: #{tpu_custom_call.1} parent=1 // pred_check_branch
      %467 = sbr.rel (0) target = $region61
    $region60: #{tpu_custom_call.1} parent=1 // pred_region
      %s469 = ssub.s32 128, 128
      %470 = vsyncadd [#allocation4], %s469
      %s472 = sshll.u32 [#allocation11], 4
      %s473 = int_to_ptr.vmem [resolvable:$true] %s472
      %475 = dma.vmem_to_hbm [thread:$0]  %s473, 128, %s9, [#allocation4]
    $region61: #{tpu_custom_call.1} parent=1 // pred_fallthru
      _
    // Predicated region
    $region62: #{tpu_custom_call.1} parent=1 // pred_check
      _
    $region63: #{tpu_custom_call.1} parent=1 // pred_check_branch
      %477 = sbr.rel (0) target = $region65
    $region64: #{tpu_custom_call.1} parent=1 // pred_region
      %478 = dma.done [#allocation4], 128
    $region65: #{tpu_custom_call.1} parent=1 // pred_fallthru
      _
    %479 = vsyncpa [#allocation3], 1
    %480 = vsyncpa [#allocation6], 1
    %481 = vsyncpa [#allocation9], 1
    %482 = vsyncpa [#allocation4], 1

</llo_original>
